<compile_context>
chip_gen: v6e
topology: v6e:2x2x1
jax: 0.10.0
libtpu: 0.0.40
codegen_flags: <defaults>
</compile_context>

<pallas_src>
import functools

import jax
import jax.numpy as jnp
from jax import lax
from jax.experimental import pallas as pl
from jax.experimental.pallas import tpu as pltpu


def _round_up(a: int, b: int) -> int:
    return (a + b - 1) // b * b


def _patch_embed_kernel(p_ref, w_ref, b_ref, g_ref, beta_ref, o_ref, *, eps):
    """One token tile: im2col matmul + conv bias + LayerNorm, fully fused.

    p_ref    : (Tm, Kp)  im2col patches tile (K = kh*kw*Cin, zero-padded to Kp)
    w_ref    : (Kp, N)   flattened conv weight (resident across the grid)
    b_ref    : (1, N)    conv bias
    g_ref    : (1, N)    LayerNorm weight (gamma)
    beta_ref : (1, N)    LayerNorm bias (beta)
    o_ref    : (Tm, N)   normalized patch embeddings
    """
    acc = jnp.dot(p_ref[...], w_ref[...], preferred_element_type=jnp.float32)
    acc = acc + b_ref[...].astype(jnp.float32)

    # LayerNorm over the embedding (lane) axis, f32 throughout.
    mean = jnp.mean(acc, axis=-1, keepdims=True)
    xc = acc - mean
    var = jnp.mean(xc * xc, axis=-1, keepdims=True)
    inv = lax.rsqrt(var + eps)
    y = xc * inv * g_ref[...].astype(jnp.float32) + beta_ref[...].astype(jnp.float32)
    o_ref[...] = y.astype(o_ref.dtype)


def patch_embed_pallas(x_nchw, proj_w_oihw, proj_b, norm_w, norm_b,
                       *, stride=4, eps=1e-5, mxu_dtype=jnp.float32,
                       tile_m=512):
    """PatchEmbed forward. x_nchw: (B, Cin, H, W), weights in PyTorch layouts.
    Returns (y, H_out, W_out) with y: (B, H_out*W_out, embed_dim)."""
    B, C, H, W = x_nchw.shape
    N, Cw, kh, kw = proj_w_oihw.shape
    assert Cw == C
    ph, pw = kh // 2, kw // 2
    H_out = (H + 2 * ph - kh) // stride + 1
    W_out = (W + 2 * pw - kw) // stride + 1

    # ---- im2col in the wrapper (XLA glue): (B*H_out*W_out, K), K = kh*kw*Cin.
    # Feature ordering is (kh, kw, cin), matching the flattened weight below.
    # TODO(synk): for very large inputs, fold the patch extraction and spatial
    # pad into the kernel via halo DMA to avoid the ~(k/stride)^2 im2col
    # HBM expansion.
    x_nhwc = jnp.transpose(x_nchw, (0, 2, 3, 1))
    x_pad = jnp.pad(x_nhwc, ((0, 0), (ph, ph), (pw, pw), (0, 0)))
    taps = []
    for dh in range(kh):
        for dw in range(kw):
            taps.append(x_pad[:, dh:dh + stride * (H_out - 1) + 1:stride,
                              dw:dw + stride * (W_out - 1) + 1:stride, :])
    patches = jnp.concatenate(taps, axis=-1)            # (B, Ho, Wo, K)
    K = kh * kw * C
    M = B * H_out * W_out
    patches = patches.reshape(M, K)

    # OIHW -> (kh, kw, cin, cout) -> (K, N): same (kh, kw, cin) ordering.
    w_mat = jnp.transpose(proj_w_oihw, (2, 3, 1, 0)).reshape(K, N)

    # ---- pad K to a sublane-friendly multiple of 8, tile the token dim. ----
    Kp = _round_up(K, 8)
    Tm = min(tile_m, _round_up(M, 8))
    M_pad = _round_up(M, Tm)
    patches = jnp.pad(patches, ((0, M_pad - M), (0, Kp - K))).astype(mxu_dtype)
    w_mat = jnp.pad(w_mat, ((0, Kp - K), (0, 0))).astype(mxu_dtype)

    b2d = proj_b.reshape(1, N).astype(jnp.float32)
    g2d = norm_w.reshape(1, N).astype(jnp.float32)
    beta2d = norm_b.reshape(1, N).astype(jnp.float32)

    out = pl.pallas_call(
        functools.partial(_patch_embed_kernel, eps=eps),
        out_shape=jax.ShapeDtypeStruct((M_pad, N), x_nchw.dtype),
        grid=(M_pad // Tm,),
        in_specs=[
            pl.BlockSpec((Tm, Kp), lambda i: (i, 0)),   # patches: streamed tiles
            pl.BlockSpec((Kp, N), lambda i: (0, 0)),    # conv weight: resident
            pl.BlockSpec((1, N), lambda i: (0, 0)),     # conv bias
            pl.BlockSpec((1, N), lambda i: (0, 0)),     # LN gamma
            pl.BlockSpec((1, N), lambda i: (0, 0)),     # LN beta
        ],
        out_specs=pl.BlockSpec((Tm, N), lambda i: (i, 0)),
        compiler_params=pltpu.CompilerParams(
            dimension_semantics=("parallel",)),
    )(patches, w_mat, b2d, g2d, beta2d)

    y = out[:M].reshape(B, H_out * W_out, N)
    return y, H_out, W_out


def patch_embed_ref(x_nchw, proj_w_oihw, proj_b, norm_w, norm_b,
                    *, stride=4, eps=1e-5):
    """Pure-JAX reference matching the PyTorch forward semantics."""
    kh, kw = proj_w_oihw.shape[2], proj_w_oihw.shape[3]
    dn = lax.conv_dimension_numbers(x_nchw.shape, proj_w_oihw.shape,
                                    ('NCHW', 'OIHW', 'NCHW'))
    y = lax.conv_general_dilated(
        x_nchw, proj_w_oihw, (stride, stride),
        ((kh // 2, kh // 2), (kw // 2, kw // 2)),
        dimension_numbers=dn, precision=lax.Precision.HIGHEST)
    y = y + proj_b[None, :, None, None]
    B, N, Ho, Wo = y.shape
    y = y.reshape(B, N, Ho * Wo).transpose(0, 2, 1)
    mean = y.mean(-1, keepdims=True)
    var = ((y - mean) ** 2).mean(-1, keepdims=True)
    y = (y - mean) / jnp.sqrt(var + eps)
    return y * norm_w + norm_b, Ho, Wo


if __name__ == "__main__":
    B, C, H, W = 2, 3, 16, 16
    patch_size, stride, embed_dim = 7, 4, 64

    key = jax.random.PRNGKey(0)
    kx, kw_, kb, kg, kbt = jax.random.split(key, 5)

    x = jax.random.normal(kx, (B, C, H, W), jnp.float32)
    fan_out = embed_dim * patch_size * patch_size
    w = jax.random.normal(kw_, (embed_dim, C, patch_size, patch_size),
                          jnp.float32) * (2.0 / fan_out) ** 0.5
    b = jax.random.normal(kb, (embed_dim,), jnp.float32) * 0.02
    gamma = 1.0 + 0.05 * jax.random.normal(kg, (embed_dim,), jnp.float32)
    beta = 0.02 * jax.random.normal(kbt, (embed_dim,), jnp.float32)

    y, Ho, Wo = patch_embed_pallas(x, w, b, gamma, beta, stride=stride)
    y = jax.block_until_ready(y)
    y_ref, Ho_r, Wo_r = patch_embed_ref(x, w, b, gamma, beta, stride=stride)
    y_ref = jax.block_until_ready(y_ref)

    assert (Ho, Wo) == (Ho_r, Wo_r) == (4, 4)
    assert y.shape == (B, Ho * Wo, embed_dim)
    max_err = float(jnp.max(jnp.abs(y - y_ref)))
    assert jnp.allclose(y, y_ref, rtol=1e-3, atol=1e-3), f"mismatch: {max_err}"
    print("KERNEL_OK")
</pallas_src>

<mosaic_0001>
module attributes {stable_mosaic.version = 11 : i64} {
  func.func @_patch_embed_kernel(%arg0: i32, %arg1: memref<32x152xf32, #tpu.memory_space<vmem>>, %arg2: memref<152x64xf32, #tpu.memory_space<vmem>>, %arg3: memref<1x64xf32, #tpu.memory_space<vmem>>, %arg4: memref<1x64xf32, #tpu.memory_space<vmem>>, %arg5: memref<1x64xf32, #tpu.memory_space<vmem>>, %arg6: memref<32x64xf32, #tpu.memory_space<vmem>>) attributes {dimension_semantics = [#tpu.dimension_semantics<parallel>], iteration_bounds = array<i64: 1>, scalar_prefetch = 0 : i64, scratch_operands = 0 : i64, tpu.core_type = #tpu.core_type<tc>, window_params = [{transform_indices = @transform_0, window_bounds = array<i64: 32, 152>}, {pipeline_mode = #tpu.pipeline_mode<synchronous>, transform_indices = @transform_1, window_bounds = array<i64: 152, 64>}, {pipeline_mode = #tpu.pipeline_mode<synchronous>, transform_indices = @transform_2, window_bounds = array<i64: 1, 64>}, {pipeline_mode = #tpu.pipeline_mode<synchronous>, transform_indices = @transform_3, window_bounds = array<i64: 1, 64>}, {pipeline_mode = #tpu.pipeline_mode<synchronous>, transform_indices = @transform_4, window_bounds = array<i64: 1, 64>}, {transform_indices = @transform_5, window_bounds = array<i64: 32, 64>}]} {
    %c0 = arith.constant 0 : index
    %c0_0 = arith.constant 0 : index
    %0 = vector.load %arg1[%c0, %c0_0] : memref<32x152xf32, #tpu.memory_space<vmem>>, vector<32x152xf32>
    %c0_1 = arith.constant 0 : index
    %c0_2 = arith.constant 0 : index
    %1 = vector.load %arg2[%c0_1, %c0_2] : memref<152x64xf32, #tpu.memory_space<vmem>>, vector<152x64xf32>
    %cst = arith.constant dense<0.000000e+00> : vector<32x64xf32>
    %2 = tpu.matmul %0, %1, %cst {dimension_numbers = #tpu.dot_dimension_numbers<[1], [0], [0], [1], [0, 0, 1, 1], [], []>} : vector<32x152xf32>, vector<152x64xf32>, vector<32x64xf32> -> vector<32x64xf32>
    %c0_3 = arith.constant 0 : index
    %c0_4 = arith.constant 0 : index
    %3 = vector.load %arg3[%c0_3, %c0_4] : memref<1x64xf32, #tpu.memory_space<vmem>>, vector<1x64xf32>
    %4 = vector.broadcast %3 : vector<1x64xf32> to vector<32x64xf32>
    %5 = arith.addf %2, %4 : vector<32x64xf32>
    %cst_5 = arith.constant dense<0.000000e+00> : vector<32xf32>
    %6 = vector.multi_reduction <add>, %5, %cst_5 [1] : vector<32x64xf32> to vector<32xf32>
    %7 = vector.shape_cast %6 : vector<32xf32> to vector<32x1xf32>
    %cst_6 = arith.constant 6.400000e+01 : f32
    %8 = vector.broadcast %cst_6 : f32 to vector<32x1xf32>
    %9 = arith.divf %7, %8 : vector<32x1xf32>
    %10 = vector.broadcast %9 : vector<32x1xf32> to vector<32x64xf32>
    %11 = arith.subf %5, %10 : vector<32x64xf32>
    %12 = arith.mulf %11, %11 : vector<32x64xf32>
    %cst_7 = arith.constant dense<0.000000e+00> : vector<32xf32>
    %13 = vector.multi_reduction <add>, %12, %cst_7 [1] : vector<32x64xf32> to vector<32xf32>
    %14 = vector.shape_cast %13 : vector<32xf32> to vector<32x1xf32>
    %cst_8 = arith.constant 6.400000e+01 : f32
    %15 = vector.broadcast %cst_8 : f32 to vector<32x1xf32>
    %16 = arith.divf %14, %15 : vector<32x1xf32>
    %cst_9 = arith.constant 9.99999974E-6 : f32
    %17 = vector.broadcast %cst_9 : f32 to vector<32x1xf32>
    %18 = arith.addf %16, %17 : vector<32x1xf32>
    %19 = math.rsqrt %18 : vector<32x1xf32>
    %20 = vector.broadcast %19 : vector<32x1xf32> to vector<32x64xf32>
    %21 = arith.mulf %11, %20 : vector<32x64xf32>
    %c0_10 = arith.constant 0 : index
    %c0_11 = arith.constant 0 : index
    %22 = vector.load %arg4[%c0_10, %c0_11] : memref<1x64xf32, #tpu.memory_space<vmem>>, vector<1x64xf32>
    %23 = vector.broadcast %22 : vector<1x64xf32> to vector<32x64xf32>
    %24 = arith.mulf %21, %23 : vector<32x64xf32>
    %c0_12 = arith.constant 0 : index
    %c0_13 = arith.constant 0 : index
    %25 = vector.load %arg5[%c0_12, %c0_13] : memref<1x64xf32, #tpu.memory_space<vmem>>, vector<1x64xf32>
    %26 = vector.broadcast %25 : vector<1x64xf32> to vector<32x64xf32>
    %27 = arith.addf %24, %26 : vector<32x64xf32>
    %c0_14 = arith.constant 0 : index
    %c0_15 = arith.constant 0 : index
    %28 = vector.load %arg6[%c0_14, %c0_15] : memref<32x64xf32, #tpu.memory_space<vmem>>, vector<32x64xf32>
    tpu.vector_store %arg6[%c0_14, %c0_15], %27 {strides = array<i32>} : memref<32x64xf32, #tpu.memory_space<vmem>>, vector<32x64xf32>,
    return
  }
  func.func @transform_0(%arg0: i32) -> (i32, i32) {
    %c0_i32 = arith.constant 0 : i32
    %c0_i32_0 = arith.constant 0 : i32
    return %arg0, %c0_i32 : i32, i32
  }
  func.func @transform_1(%arg0: i32) -> (i32, i32) {
    %c0_i32 = arith.constant 0 : i32
    %c0_i32_0 = arith.constant 0 : i32
    %c0_i32_1 = arith.constant 0 : i32
    return %c0_i32, %c0_i32_0 : i32, i32
  }
  func.func @transform_2(%arg0: i32) -> (i32, i32) {
    %c0_i32 = arith.constant 0 : i32
    %c0_i32_0 = arith.constant 0 : i32
    %c0_i32_1 = arith.constant 0 : i32
    return %c0_i32, %c0_i32_0 : i32, i32
  }
  func.func @transform_3(%arg0: i32) -> (i32, i32) {
    %c0_i32 = arith.constant 0 : i32
    %c0_i32_0 = arith.constant 0 : i32
    %c0_i32_1 = arith.constant 0 : i32
    return %c0_i32, %c0_i32_0 : i32, i32
  }
  func.func @transform_4(%arg0: i32) -> (i32, i32) {
    %c0_i32 = arith.constant 0 : i32
    %c0_i32_0 = arith.constant 0 : i32
    %c0_i32_1 = arith.constant 0 : i32
    return %c0_i32, %c0_i32_0 : i32, i32
  }
  func.func @transform_5(%arg0: i32) -> (i32, i32) {
    %c0_i32 = arith.constant 0 : i32
    %c0_i32_0 = arith.constant 0 : i32
    return %arg0, %c0_i32 : i32, i32
  }
}

</mosaic_0001>

<llo_original>
// kernel: tpu_custom_call.1
$region0: #{tpu_custom_call.1}
  #allocation0 [shape = 'u32[]', space=smem, size = 0x4, offset = 0x4, fixed_abs, tag = 'smem constant byte address 0x4 - core index']
  #allocation1 [shape = 'u32[144,128]{1,0:T(1,128)}', space=vmem, size = 0x12000, scoped, tag = 'internal scratch']
  %s0 = inlined_call_operand.vmem [shape: f32[32,152], index: 0, kind: input, shape index: {}]
  %s1 = inlined_call_operand.vmem [shape: f32[152,64], index: 1, kind: input, shape index: {}]
  %s2 = inlined_call_operand.vmem [shape: f32[1,64], index: 2, kind: input, shape index: {}]
  %s3 = inlined_call_operand.vmem [shape: f32[1,64], index: 3, kind: input, shape index: {}]
  %s4 = inlined_call_operand.vmem [shape: f32[1,64], index: 4, kind: input, shape index: {}]
  %s5 = inlined_call_operand.hbm [shape: f32[32,64], index: 5, kind: output, shape index: {}]
  %s6 = sld [smem:[#allocation0]]
  $region30: #{tpu_custom_call.1} parent=0
    _
  %s8 = ssub.s32 1, %s6
  %s9 = scalar_select 0, %s8, %s6
  $region1: #{tpu_custom_call.1} parent=0
    #allocation2 [shape = 'u8[16384]{0}', space=vmem, size = 0x4000, scoped, tag = 'output window, operand 0, single buffered']
    #allocation3 [shape = 's32[1]{0}', space=sflag, size = 0x4, scoped, tag = 'scoped memory for tpu_custom_call.1']
    %10 = vsyncpa [#allocation3], 0
    // Predicated region
    $region2: #{tpu_custom_call.1} parent=1 // pred_check
      _
    $region3: #{tpu_custom_call.1} parent=1 // pred_check_branch
      %12 = sbr.rel (0) target = $region5
    $region4: #{tpu_custom_call.1} parent=1 // pred_region
      _
    $region5: #{tpu_custom_call.1} parent=1 // pred_fallthru
      _
    // Predicated region
    $region6: #{tpu_custom_call.1} parent=1 // pred_check
      _
    $region7: #{tpu_custom_call.1} parent=1 // pred_check_branch
      %14 = sbr.rel (0) target = $region9
    $region8: #{tpu_custom_call.1} parent=1 // pred_region
      _
    $region9: #{tpu_custom_call.1} parent=1 // pred_fallthru
      _
    // Predicated region
    $region10: #{tpu_custom_call.1} parent=1 // pred_check
      _
    $region11: #{tpu_custom_call.1} parent=1 // pred_check_branch
      %16 = sbr.rel (0) target = $region13
    $region12: #{tpu_custom_call.1} parent=1 // pred_region
      _
    $region13: #{tpu_custom_call.1} parent=1 // pred_fallthru
      _
    // Predicated region
    $region14: #{tpu_custom_call.1} parent=1 // pred_check
      _
    $region15: #{tpu_custom_call.1} parent=1 // pred_check_branch
      %18 = sbr.rel (0) target = $region17
    $region16: #{tpu_custom_call.1} parent=1 // pred_region
      _
    $region17: #{tpu_custom_call.1} parent=1 // pred_fallthru
      _
    // Predicated region
    $region18: #{tpu_custom_call.1} parent=1 // pred_check
      _
    $region19: #{tpu_custom_call.1} parent=1 // pred_check_branch
      %20 = sbr.rel (0) target = $region21
    $region20: #{tpu_custom_call.1} parent=1 // pred_region
      _
    $region21: #{tpu_custom_call.1} parent=1 // pred_fallthru
      _
    %v21 = vld [vmem:[%s0] sm:$0xff]
    %v22 = vld [vmem:[%s0 + $0x8] sm:$0xff]
    %v23 = vld [vmem:[%s0 + $0x10] sm:$0xff]
    %v24 = vld [vmem:[%s0 + $0x18] sm:$0xff]
    %v25 = vld [vmem:[%s0 + $0x20] sm:$0xff]
    %v26 = vld [vmem:[%s0 + $0x28] sm:$0xff]
    %v27 = vld [vmem:[%s0 + $0x30] sm:$0xff]
    %v28 = vld [vmem:[%s0 + $0x38] sm:$0xff]
    %v29 = vld [vmem:[%s1] sm:$0xff]
    %v30 = vld [vmem:[%s1 + $0x8] sm:$0xff]
    %v31 = vld [vmem:[%s1 + $0x10] sm:$0xff]
    %v32 = vld [vmem:[%s1 + $0x18] sm:$0xff]
    %v33 = vld [vmem:[%s1 + $0x20] sm:$0xff]
    %v34 = vld [vmem:[%s1 + $0x28] sm:$0xff]
    %v35 = vld [vmem:[%s1 + $0x30] sm:$0xff]
    %v36 = vld [vmem:[%s1 + $0x38] sm:$0xff]
    %v37 = vld [vmem:[%s1 + $0x40] sm:$0xff]
    %v38 = vld [vmem:[%s1 + $0x48] sm:$0xff]
    %v39 = vld [vmem:[%s1 + $0x50] sm:$0xff]
    %v40 = vld [vmem:[%s1 + $0x58] sm:$0xff]
    %v41 = vld [vmem:[%s1 + $0x60] sm:$0xff]
    %v42 = vld [vmem:[%s1 + $0x68] sm:$0xff]
    %v43 = vld [vmem:[%s1 + $0x70] sm:$0xff]
    %v44 = vld [vmem:[%s1 + $0x78] sm:$0xff]
    %v45 = vld [vmem:[%s1 + $0x80] sm:$0xff]
    %v46 = vld [vmem:[%s1 + $0x88] sm:$0xff]
    %v47 = vld [vmem:[%s1 + $0x90] sm:$0xff]
    %v48 = vld [vmem:[%s2] sm:$0x1]
    %v50 = vlaneseq
    %v51 = vshrl.u32 %v50, 7
    %v52 = vsub.s32 0, %v51
    %v53 = vrot.slane %v48, %v52
    %vm55 = vcmask 195584
    %v57 = vsel %vm55, %v22, 0
    %v60 = vsel %vm55, %v24, 0
    %v63 = vsel %vm55, %v26, 0
    %v66 = vsel %vm55, %v28, 0
    %68 = vmatprep.subr.mxu0 0.0
    %69 = vmatpush1.msra.mxu0 %v44
    %70 = vmatprep.subr.mxu0 0.0
    %71 = vmatpush1.msra.mxu0 %v43
    %72 = vmatprep.subr.mxu0 0.0
    %73 = vmatpush1.msra.mxu0 %v42
    %74 = vmatprep.subr.mxu0 0.0
    %75 = vmatpush1.msra.mxu0 %v41
    %76 = vmatprep.subr.mxu0 0.0
    %77 = vmatpush1.msra.mxu0 %v40
    %78 = vmatprep.subr.mxu0 0.0
    %79 = vmatpush1.msra.mxu0 %v39
    %80 = vmatprep.subr.mxu0 0.0
    %81 = vmatpush1.msra.mxu0 %v38
    %82 = vmatprep.subr.mxu0 0.0
    %83 = vmatpush1.msra.mxu0 %v37
    %84 = vmatprep.subr.mxu0 0.0
    %85 = vmatpush1.msra.mxu0 %v36
    %86 = vmatprep.subr.mxu0 0.0
    %87 = vmatpush1.msra.mxu0 %v35
    %88 = vmatprep.subr.mxu0 0.0
    %89 = vmatpush1.msra.mxu0 %v34
    %90 = vmatprep.subr.mxu0 0.0
    %91 = vmatpush1.msra.mxu0 %v33
    %92 = vmatprep.subr.mxu0 0.0
    %93 = vmatpush1.msra.mxu0 %v32
    %94 = vmatprep.subr.mxu0 0.0
    %95 = vmatpush1.msra.mxu0 %v31
    %96 = vmatprep.subr.mxu0 0.0
    %97 = vmatpush1.msra.mxu0 %v30
    %98 = vmatprep.subr.mxu0 0.0
    %99 = vmatpush1.msra.mxu0 %v29
    %100 = vmatprep.subr.mxu0 0.0
    %101 = vmatpush2.msra.mxu0 0.0
    %102 = vmatprep.subr.mxu0 0.0
    %103 = vmatpush2.msra.mxu0 0.0
    %104 = vmatprep.subr.mxu0 0.0
    %105 = vmatpush2.msra.mxu0 0.0
    %106 = vmatprep.subr.mxu0 0.0
    %107 = vmatpush2.msra.mxu0 0.0
    %108 = vmatprep.subr.mxu0 0.0
    %109 = vmatpush2.msra.mxu0 0.0
    %110 = vmatprep.subr.mxu0 0.0
    %111 = vmatpush2.msra.mxu0 0.0
    %112 = vmatprep.subr.mxu0 0.0
    %113 = vmatpush2.msra.mxu0 0.0
    %114 = vmatprep.subr.mxu0 0.0
    %115 = vmatpush2.msra.mxu0 0.0
    %116 = vmatprep.subr.mxu0 0.0
    %117 = vmatpush2.msra.mxu0 0.0
    %118 = vmatprep.subr.mxu0 0.0
    %119 = vmatpush2.msra.mxu0 0.0
    %120 = vmatprep.subr.mxu0 0.0
    %121 = vmatpush2.msra.mxu0 0.0
    %122 = vmatprep.subr.mxu0 0.0
    %123 = vmatpush2.msra.mxu0 0.0
    %124 = vmatprep.subr.mxu0 0.0
    %125 = vmatpush2.msra.mxu0 0.0
    %126 = vmatprep.subr.mxu0 0.0
    %127 = vmatpush2.msra.mxu0 %v47
    %128 = vmatprep.subr.mxu0 0.0
    %129 = vmatpush2.msra.mxu0 %v46
    %130 = vmatprep.subr.mxu0 0.0
    %131 = vmatpush2.msra.mxu0 %v45
    %132 = vmatprep.mubr.f32.mxu0 %v57
    %133 = vmatmul.mubr.f32.gmra.mxu0 %v21
    %v134 = vpop.f32.mrf.mxu0
    %v135 = vadd.f32 %v53, %v134
    %v136 = vpop.f32.mrf.mxu0
    %137 = vmatprep.mubr.f32.mxu0 %v60
    %138 = vmatmul.mubr.f32.gmra.mxu0 %v23
    %v139 = vpop.f32.mrf.mxu0
    %v140 = vadd.f32 %v53, %v139
    %v141 = vpop.f32.mrf.mxu0
    %142 = vmatprep.mubr.f32.mxu0 %v63
    %143 = vmatmul.mubr.f32.gmra.mxu0 %v25
    %v144 = vpop.f32.mrf.mxu0
    %v145 = vadd.f32 %v53, %v144
    %v146 = vpop.f32.mrf.mxu0
    %147 = vmatprep.mubr.f32.mxu0 %v66
    %148 = vmatmul.mubr.f32.gmra.mxu0 %v27
    %v149 = vpop.f32.mrf.mxu0
    %v150 = vadd.f32 %v53, %v149
    %v151 = vpop.f32.mrf.mxu0
    %152 = vdwg.mxu0
    %vm153 = vcmask 523264
    %v154 = vsel %vm153, %v135, 0.0
    %155 = vadd.xlane.f32.xlu0 %v154
    %v156 = vpop.xlane.xlu0 %155
    %v157 = vsel %vm153, %v140, 0.0
    %158 = vadd.xlane.f32.xlu0 %v157
    %v159 = vpop.xlane.xlu0 %158
    %v160 = vsel %vm153, %v145, 0.0
    %161 = vadd.xlane.f32.xlu0 %v160
    %v162 = vpop.xlane.xlu0 %161
    %v163 = vsel %vm153, %v150, 0.0
    %164 = vadd.xlane.f32.xlu0 %v163
    %v165 = vpop.xlane.xlu0 %164
    %v166 = vrcp.pop 64.0
    %v167 = vmul.f32 %v156, %v166
    %v168 = vmul.f32 %v159, %v166
    %v169 = vmul.f32 %v162, %v166
    %v170 = vmul.f32 %v165, %v166
    %v171 = vsub.f32 %v135, %v167
    %v172 = vsub.f32 %v140, %v168
    %v173 = vsub.f32 %v145, %v169
    %v174 = vsub.f32 %v150, %v170
    %v175 = vmul.f32 %v171, %v171
    %v176 = vmul.f32 %v172, %v172
    %v177 = vmul.f32 %v173, %v173
    %v178 = vmul.f32 %v174, %v174
    %v179 = vsel %vm153, %v175, 0.0
    %180 = vadd.xlane.f32.xlu0 %v179
    %v181 = vpop.xlane.xlu0 %180
    %v182 = vsel %vm153, %v176, 0.0
    %183 = vadd.xlane.f32.xlu0 %v182
    %v184 = vpop.xlane.xlu0 %183
    %v185 = vsel %vm153, %v177, 0.0
    %186 = vadd.xlane.f32.xlu0 %v185
    %v187 = vpop.xlane.xlu0 %186
    %v188 = vsel %vm153, %v178, 0.0
    %189 = vadd.xlane.f32.xlu0 %v188
    %v190 = vpop.xlane.xlu0 %189
    %v191 = vmul.f32 %v181, %v166
    %v192 = vmul.f32 %v184, %v166
    %v193 = vmul.f32 %v187, %v166
    %v194 = vmul.f32 %v190, %v166
    %v195 = vadd.f32 %v191, 1e-05
    %v196 = vadd.f32 %v192, 1e-05
    %v197 = vadd.f32 %v193, 1e-05
    %v198 = vadd.f32 %v194, 1e-05
    %v199 = vrsqrt.pop %v195
    %v200 = vrsqrt.pop %v196
    %v201 = vrsqrt.pop %v197
    %v202 = vrsqrt.pop %v198
    %v203 = vmul.f32 %v171, %v199
    %v204 = vmul.f32 %v172, %v200
    %v205 = vmul.f32 %v173, %v201
    %v206 = vmul.f32 %v174, %v202
    %v207 = vld [vmem:[%s3] sm:$0x1]
    %v209 = vlaneseq
    %v210 = vshrl.u32 %v209, 7
    %v211 = vsub.s32 0, %v210
    %v212 = vrot.slane %v207, %v211
    %v214 = vmul.f32 %v203, %v212
    %v215 = vmul.f32 %v204, %v212
    %v216 = vmul.f32 %v205, %v212
    %v217 = vmul.f32 %v206, %v212
    %v218 = vld [vmem:[%s4] sm:$0x1]
    %v220 = vlaneseq
    %v221 = vshrl.u32 %v220, 7
    %v222 = vsub.s32 0, %v221
    %v223 = vrot.slane %v218, %v222
    %v225 = vadd.f32 %v214, %v223
    %v226 = vadd.f32 %v215, %v223
    %v227 = vadd.f32 %v216, %v223
    %v228 = vadd.f32 %v217, %v223
    %229 = vst.msk [vmem:[#allocation2] sm:$0xff] %vm153, %v225
    %230 = vst.msk [vmem:[#allocation2 + $0x8] sm:$0xff] %vm153, %v226
    %231 = vst.msk [vmem:[#allocation2 + $0x10] sm:$0xff] %vm153, %v227
    %232 = vst.msk [vmem:[#allocation2 + $0x18] sm:$0xff] %vm153, %v228
    // Predicated region
    $region22: #{tpu_custom_call.1} parent=1 // pred_check
      _
    $region23: #{tpu_custom_call.1} parent=1 // pred_check_branch
      %234 = sbr.rel (0) target = $region25
    $region24: #{tpu_custom_call.1} parent=1 // pred_region
      %s236 = ssub.s32 512, 512
      %237 = vsyncadd [#allocation3], %s236
      %s238 = sshll.u32 [#allocation2], 4
      %s239 = int_to_ptr.vmem [resolvable:$true] %s238
      %244 = dma.vmem_to_hbm [thread:$0]  %s239, 512, %s5, [#allocation3], 128, 128, 8
    $region25: #{tpu_custom_call.1} parent=1 // pred_fallthru
      _
    // Predicated region
    $region26: #{tpu_custom_call.1} parent=1 // pred_check
      _
    $region27: #{tpu_custom_call.1} parent=1 // pred_check_branch
      %246 = sbr.rel (0) target = $region29
    $region28: #{tpu_custom_call.1} parent=1 // pred_region
      %247 = dma.done [#allocation3], 512
    $region29: #{tpu_custom_call.1} parent=1 // pred_fallthru
      _
    %248 = vsyncpa [#allocation3], 1

</llo_original>
